<compile_context>
chip_gen: v7x
topology: tpu7x:2x2x1
jax: 0.10.0
libtpu: 0.0.40
codegen_flags: <defaults>
</compile_context>

<pallas_src>
import jax
import jax.numpy as jnp
from jax.experimental import pallas as pl
from jax.experimental.pallas import tpu as pltpu

IN_DIM = 100   # real input features of the PyTorch module
K_PAD = 128    # layer-1 contraction dim padded for lane alignment
H1, H2, OUT_DIM = 128, 256, 512


def _round_up(n, m):
    return ((n + m - 1) // m) * m


def generator_kernel(x_ref, w1_ref, b1_ref, w2_ref, b2_ref, w3_ref, b3_ref, o_ref):
    # Layer 1: Linear(100 -> 128) + ReLU   (K padded to 128 with zero rows/cols)
    h1 = jnp.dot(x_ref[...], w1_ref[...], preferred_element_type=jnp.float32)
    h1 = jnp.maximum(h1 + b1_ref[...], 0.0).astype(jnp.bfloat16)
    # Layer 2: Linear(128 -> 256) + ReLU
    h2 = jnp.dot(h1, w2_ref[...], preferred_element_type=jnp.float32)
    h2 = jnp.maximum(h2 + b2_ref[...], 0.0).astype(jnp.bfloat16)
    # Layer 3: Linear(256 -> 512) + Tanh (tanh -> EUP)
    h3 = jnp.dot(h2, w3_ref[...], preferred_element_type=jnp.float32)
    o_ref[...] = jnp.tanh(h3 + b3_ref[...]).astype(o_ref.dtype)


def generator_forward(x, params, *, tile_b=256):
    w1, b1, w2, b2, w3, b3 = params
    B = x.shape[0]
    k_pad = w1.shape[0]
    out_dim = w3.shape[1]

    # Batch tile: at most tile_b rows, at least the 8-aligned batch itself.
    tb = min(tile_b, _round_up(B, 8))
    b_pad = _round_up(B, tb)

    # Pad batch and the contraction dim (100 -> 128) with zeros; bf16 input.
    x_p = jnp.zeros((b_pad, k_pad), jnp.bfloat16)
    x_p = x_p.at[:B, : x.shape[1]].set(x.astype(jnp.bfloat16))

    grid = (b_pad // tb,)

    flops = 2 * b_pad * (k_pad * H1 + H1 * H2 + H2 * OUT_DIM)
    bytes_accessed = (
        x_p.size * 2
        + (w1.size + w2.size + w3.size) * 2
        + (b1.size + b2.size + b3.size) * 4
        + b_pad * out_dim * 4
    )
    cost = pl.CostEstimate(
        flops=int(flops),
        transcendentals=int(b_pad * out_dim),
        bytes_accessed=int(bytes_accessed),
    )

    out = pl.pallas_call(
        generator_kernel,
        out_shape=jax.ShapeDtypeStruct((b_pad, out_dim), jnp.float32),
        grid_spec=pltpu.PrefetchScalarGridSpec(
            num_scalar_prefetch=0,
            grid=grid,
            in_specs=[
                pl.BlockSpec((tb, k_pad), lambda i: (i, 0)),   # x tiled on batch
                pl.BlockSpec(w1.shape, lambda i: (0, 0)),      # weights/biases:
                pl.BlockSpec(b1.shape, lambda i: (0, 0)),      # same block every grid
                pl.BlockSpec(w2.shape, lambda i: (0, 0)),      # step -> loaded once,
                pl.BlockSpec(b2.shape, lambda i: (0, 0)),      # VMEM-resident
                pl.BlockSpec(w3.shape, lambda i: (0, 0)),
                pl.BlockSpec(b3.shape, lambda i: (0, 0)),
            ],
            out_specs=pl.BlockSpec((tb, out_dim), lambda i: (i, 0)),
        ),
        compiler_params=pltpu.CompilerParams(
            dimension_semantics=("parallel",),  # batch axis -> both TCs on v7x
        ),
        cost_estimate=cost,
    )(x_p, w1, b1, w2, b2, w3, b3)
    return out[:B]


def init_params(key):
    """Deterministic init mimicking nn.Linear default: U(-1/sqrt(fan_in), 1/sqrt(fan_in)).
    Weights stored bf16 (HBM-traffic dominant); biases stay f32 (added in f32)."""
    dims = [(IN_DIM, H1), (H1, H2), (H2, OUT_DIM)]
    raw = []
    for fan_in, fan_out in dims:
        key, kw, kb = jax.random.split(key, 3)
        bound = 1.0 / jnp.sqrt(float(fan_in))
        w = jax.random.uniform(kw, (fan_in, fan_out), jnp.float32, -bound, bound)
        b = jax.random.uniform(kb, (1, fan_out), jnp.float32, -bound, bound)
        raw.append((w, b))
    (w1, b1), (w2, b2), (w3, b3) = raw
    # Pad layer-1 contraction dim 100 -> 128 with zero rows (matches zero-padded x cols).
    w1 = jnp.pad(w1, ((0, K_PAD - IN_DIM), (0, 0)))
    return (
        w1.astype(jnp.bfloat16), b1,
        w2.astype(jnp.bfloat16), b2,
        w3.astype(jnp.bfloat16), b3,
    )


def reference_forward(x, params):
    """Pure-JAX reference using the same bf16-rounded weights/input, f32 compute."""
    w1, b1, w2, b2, w3, b3 = params
    xf = x.astype(jnp.bfloat16).astype(jnp.float32)
    xf = jnp.pad(xf, ((0, 0), (0, w1.shape[0] - xf.shape[1])))
    w1f, w2f, w3f = (w.astype(jnp.float32) for w in (w1, w2, w3))
    h1 = jnp.maximum(xf @ w1f + b1, 0.0)
    h2 = jnp.maximum(h1 @ w2f + b2, 0.0)
    return jnp.tanh(h2 @ w3f + b3)


if __name__ == "__main__":
    key = jax.random.PRNGKey(0)
    kx, kp = jax.random.split(key)
    batch = 8
    x = jax.random.normal(kx, (batch, IN_DIM), jnp.float32)
    params = init_params(kp)

    out = generator_forward(x, params)
    out = jax.block_until_ready(out)

    ref = reference_forward(x, params)
    assert out.shape == (batch, OUT_DIM), out.shape
    # bf16 weights/activations inside the kernel -> looser tolerance than f32.
    assert jnp.allclose(out, ref, atol=1e-2, rtol=1e-2), "mismatch vs reference"
    print("KERNEL_OK")
</pallas_src>

<mosaic_0001>
module attributes {stable_mosaic.version = 11 : i64} {
  func.func @generator_kernel(%arg0: i32, %arg1: memref<8x128xbf16, #tpu.memory_space<vmem>>, %arg2: memref<128x128xbf16, #tpu.memory_space<vmem>>, %arg3: memref<1x128xf32, #tpu.memory_space<vmem>>, %arg4: memref<128x256xbf16, #tpu.memory_space<vmem>>, %arg5: memref<1x256xf32, #tpu.memory_space<vmem>>, %arg6: memref<256x512xbf16, #tpu.memory_space<vmem>>, %arg7: memref<1x512xf32, #tpu.memory_space<vmem>>, %arg8: memref<8x512xf32, #tpu.memory_space<vmem>>) attributes {dimension_semantics = [#tpu.dimension_semantics<parallel>], iteration_bounds = array<i64: 1>, scalar_prefetch = 0 : i64, scratch_operands = 0 : i64, tpu.core_type = #tpu.core_type<tc>, window_params = [{transform_indices = @transform_0, window_bounds = array<i64: 8, 128>}, {pipeline_mode = #tpu.pipeline_mode<synchronous>, transform_indices = @transform_1, window_bounds = array<i64: 128, 128>}, {pipeline_mode = #tpu.pipeline_mode<synchronous>, transform_indices = @transform_2, window_bounds = array<i64: 1, 128>}, {pipeline_mode = #tpu.pipeline_mode<synchronous>, transform_indices = @transform_3, window_bounds = array<i64: 128, 256>}, {pipeline_mode = #tpu.pipeline_mode<synchronous>, transform_indices = @transform_4, window_bounds = array<i64: 1, 256>}, {pipeline_mode = #tpu.pipeline_mode<synchronous>, transform_indices = @transform_5, window_bounds = array<i64: 256, 512>}, {pipeline_mode = #tpu.pipeline_mode<synchronous>, transform_indices = @transform_6, window_bounds = array<i64: 1, 512>}, {transform_indices = @transform_7, window_bounds = array<i64: 8, 512>}]} {
    %c0 = arith.constant 0 : index
    %c0_0 = arith.constant 0 : index
    %0 = vector.load %arg1[%c0, %c0_0] : memref<8x128xbf16, #tpu.memory_space<vmem>>, vector<8x128xbf16>
    %c0_1 = arith.constant 0 : index
    %c0_2 = arith.constant 0 : index
    %1 = vector.load %arg2[%c0_1, %c0_2] : memref<128x128xbf16, #tpu.memory_space<vmem>>, vector<128x128xbf16>
    %cst = arith.constant dense<0.000000e+00> : vector<8x128xf32>
    %2 = tpu.matmul %0, %1, %cst {dimension_numbers = #tpu.dot_dimension_numbers<[1], [0], [0], [1], [0, 0, 1, 1], [], []>} : vector<8x128xbf16>, vector<128x128xbf16>, vector<8x128xf32> -> vector<8x128xf32>
    %c0_3 = arith.constant 0 : index
    %c0_4 = arith.constant 0 : index
    %3 = vector.load %arg3[%c0_3, %c0_4] : memref<1x128xf32, #tpu.memory_space<vmem>>, vector<1x128xf32>
    %4 = vector.broadcast %3 : vector<1x128xf32> to vector<8x128xf32>
    %5 = arith.addf %2, %4 : vector<8x128xf32>
    %cst_5 = arith.constant 0.000000e+00 : f32
    %6 = vector.broadcast %cst_5 : f32 to vector<8x128xf32>
    %7 = arith.maximumf %5, %6 : vector<8x128xf32>
    %8 = arith.truncf %7 : vector<8x128xf32> to vector<8x128xbf16>
    %c0_6 = arith.constant 0 : index
    %c0_7 = arith.constant 0 : index
    %9 = vector.load %arg4[%c0_6, %c0_7] : memref<128x256xbf16, #tpu.memory_space<vmem>>, vector<128x256xbf16>
    %cst_8 = arith.constant dense<0.000000e+00> : vector<8x256xf32>
    %10 = tpu.matmul %8, %9, %cst_8 {dimension_numbers = #tpu.dot_dimension_numbers<[1], [0], [0], [1], [0, 0, 1, 1], [], []>} : vector<8x128xbf16>, vector<128x256xbf16>, vector<8x256xf32> -> vector<8x256xf32>
    %c0_9 = arith.constant 0 : index
    %c0_10 = arith.constant 0 : index
    %11 = vector.load %arg5[%c0_9, %c0_10] : memref<1x256xf32, #tpu.memory_space<vmem>>, vector<1x256xf32>
    %12 = vector.broadcast %11 : vector<1x256xf32> to vector<8x256xf32>
    %13 = arith.addf %10, %12 : vector<8x256xf32>
    %cst_11 = arith.constant 0.000000e+00 : f32
    %14 = vector.broadcast %cst_11 : f32 to vector<8x256xf32>
    %15 = arith.maximumf %13, %14 : vector<8x256xf32>
    %16 = arith.truncf %15 : vector<8x256xf32> to vector<8x256xbf16>
    %c0_12 = arith.constant 0 : index
    %c0_13 = arith.constant 0 : index
    %17 = vector.load %arg6[%c0_12, %c0_13] : memref<256x512xbf16, #tpu.memory_space<vmem>>, vector<256x512xbf16>
    %cst_14 = arith.constant dense<0.000000e+00> : vector<8x512xf32>
    %18 = tpu.matmul %16, %17, %cst_14 {dimension_numbers = #tpu.dot_dimension_numbers<[1], [0], [0], [1], [0, 0, 1, 1], [], []>} : vector<8x256xbf16>, vector<256x512xbf16>, vector<8x512xf32> -> vector<8x512xf32>
    %c0_15 = arith.constant 0 : index
    %c0_16 = arith.constant 0 : index
    %19 = vector.load %arg7[%c0_15, %c0_16] : memref<1x512xf32, #tpu.memory_space<vmem>>, vector<1x512xf32>
    %20 = vector.broadcast %19 : vector<1x512xf32> to vector<8x512xf32>
    %21 = arith.addf %18, %20 : vector<8x512xf32>
    %22 = math.tanh %21 : vector<8x512xf32>
    %c0_17 = arith.constant 0 : index
    %c0_18 = arith.constant 0 : index
    %23 = vector.load %arg8[%c0_17, %c0_18] : memref<8x512xf32, #tpu.memory_space<vmem>>, vector<8x512xf32>
    tpu.vector_store %arg8[%c0_17, %c0_18], %22 {strides = array<i32>} : memref<8x512xf32, #tpu.memory_space<vmem>>, vector<8x512xf32>,
    return
  }
  func.func @transform_0(%arg0: i32) -> (i32, i32) {
    %c0_i32 = arith.constant 0 : i32
    %c0_i32_0 = arith.constant 0 : i32
    return %arg0, %c0_i32 : i32, i32
  }
  func.func @transform_1(%arg0: i32) -> (i32, i32) {
    %c0_i32 = arith.constant 0 : i32
    %c0_i32_0 = arith.constant 0 : i32
    %c0_i32_1 = arith.constant 0 : i32
    return %c0_i32, %c0_i32_0 : i32, i32
  }
  func.func @transform_2(%arg0: i32) -> (i32, i32) {
    %c0_i32 = arith.constant 0 : i32
    %c0_i32_0 = arith.constant 0 : i32
    %c0_i32_1 = arith.constant 0 : i32
    return %c0_i32, %c0_i32_0 : i32, i32
  }
  func.func @transform_3(%arg0: i32) -> (i32, i32) {
    %c0_i32 = arith.constant 0 : i32
    %c0_i32_0 = arith.constant 0 : i32
    %c0_i32_1 = arith.constant 0 : i32
    return %c0_i32, %c0_i32_0 : i32, i32
  }
  func.func @transform_4(%arg0: i32) -> (i32, i32) {
    %c0_i32 = arith.constant 0 : i32
    %c0_i32_0 = arith.constant 0 : i32
    %c0_i32_1 = arith.constant 0 : i32
    return %c0_i32, %c0_i32_0 : i32, i32
  }
  func.func @transform_5(%arg0: i32) -> (i32, i32) {
    %c0_i32 = arith.constant 0 : i32
    %c0_i32_0 = arith.constant 0 : i32
    %c0_i32_1 = arith.constant 0 : i32
    return %c0_i32, %c0_i32_0 : i32, i32
  }
  func.func @transform_6(%arg0: i32) -> (i32, i32) {
    %c0_i32 = arith.constant 0 : i32
    %c0_i32_0 = arith.constant 0 : i32
    %c0_i32_1 = arith.constant 0 : i32
    return %c0_i32, %c0_i32_0 : i32, i32
  }
  func.func @transform_7(%arg0: i32) -> (i32, i32) {
    %c0_i32 = arith.constant 0 : i32
    %c0_i32_0 = arith.constant 0 : i32
    return %arg0, %c0_i32 : i32, i32
  }
}

</mosaic_0001>

<llo_original>
// kernel: tpu_custom_call.1
$region0: #{tpu_custom_call.1}
  #allocation0 [shape = 'u32[]', space=smem, size = 0x4, offset = 0x4, fixed_abs, tag = 'smem constant byte address 0x4 - core index']
  #allocation1 [shape = 'u32[144,128]{1,0:T(1,128)}', space=vmem, size = 0x12000, scoped, tag = 'internal scratch']
  %s0 = inlined_call_operand.hbm [shape: bf16[8,128], index: 0, kind: input, shape index: {}]
  %s1 = inlined_call_operand.hbm [shape: bf16[128,128], index: 1, kind: input, shape index: {}]
  %s2 = inlined_call_operand.vmem [shape: f32[1,128], index: 2, kind: input, shape index: {}]
  %s3 = inlined_call_operand.hbm [shape: bf16[128,256], index: 3, kind: input, shape index: {}]
  %s4 = inlined_call_operand.vmem [shape: f32[1,256], index: 4, kind: input, shape index: {}]
  %s5 = inlined_call_operand.hbm [shape: bf16[256,512], index: 5, kind: input, shape index: {}]
  %s6 = inlined_call_operand.vmem [shape: f32[1,512], index: 6, kind: input, shape index: {}]
  %s7 = inlined_call_operand.hbm [shape: f32[8,512], index: 7, kind: output, shape index: {}]
  %s8 = sld [smem:[#allocation0]]
  $region54: #{tpu_custom_call.1} parent=0
    _
  %s10 = ssub.s32 1, %s8
  %s11 = scalar_select 0, %s10, %s8
  $region1: #{tpu_custom_call.1} parent=0
    #allocation2 [shape = 'u8[2048]{0}', space=vmem, size = 0x800, scoped, tag = 'input window, operand 0, single buffered']
    #allocation3 [shape = 's32[1]{0}', space=sflag, size = 0x4, scoped, tag = 'scoped memory for tpu_custom_call.1']
    #allocation4 [shape = 's32[1]{0}', space=sflag, size = 0x4, scoped, tag = 'scoped memory for tpu_custom_call.1']
    #allocation5 [shape = 'u8[32768]{0}', space=vmem, size = 0x8000, scoped, tag = 'input window, operand 1, single buffered']
    #allocation6 [shape = 's32[1]{0}', space=sflag, size = 0x4, scoped, tag = 'scoped memory for tpu_custom_call.1']
    #allocation7 [shape = 'u8[65536]{0}', space=vmem, size = 0x10000, scoped, tag = 'input window, operand 3, single buffered']
    #allocation8 [shape = 'u8[262144]{0}', space=vmem, size = 0x40000, scoped, tag = 'input window, operand 5, single buffered']
    #allocation9 [shape = 's32[1]{0}', space=sflag, size = 0x4, scoped, tag = 'scoped memory for tpu_custom_call.1']
    #allocation10 [shape = 'u8[16384]{0}', space=vmem, size = 0x4000, scoped, tag = 'output window, operand 0, single buffered']
    %12 = vsyncpa [#allocation3], 0
    %13 = vsyncpa [#allocation6], 0
    %14 = vsyncpa [#allocation9], 0
    %15 = vsyncpa [#allocation4], 0
    // Predicated region
    $region2: #{tpu_custom_call.1} parent=1 // pred_check
      _
    $region3: #{tpu_custom_call.1} parent=1 // pred_check_branch
      %17 = sbr.rel (0) target = $region5
    $region4: #{tpu_custom_call.1} parent=1 // pred_region
      %s19 = ssub.s32 64, 64
      %20 = vsyncadd [#allocation3], %s19
      %s22 = sshll.u32 [#allocation2], 4
      %s23 = int_to_ptr.vmem [resolvable:$true] %s22
      %25 = dma.hbm_to_vmem [thread:$0]  %s0, 64, %s23, [#allocation3]
    $region5: #{tpu_custom_call.1} parent=1 // pred_fallthru
      _
    // Predicated region
    $region6: #{tpu_custom_call.1} parent=1 // pred_check
      _
    $region7: #{tpu_custom_call.1} parent=1 // pred_check_branch
      %27 = sbr.rel (0) target = $region9
    $region8: #{tpu_custom_call.1} parent=1 // pred_region
      %s29 = ssub.s32 1024, 1024
      %30 = vsyncadd [#allocation6], %s29
      %s31 = sshll.u32 [#allocation5], 4
      %s32 = int_to_ptr.vmem [resolvable:$true] %s31
      %37 = dma.hbm_to_vmem [thread:$0]  %s1, 1024, %s32, [#allocation6], 64, 64, 4
    $region9: #{tpu_custom_call.1} parent=1 // pred_fallthru
      _
    // Predicated region
    $region10: #{tpu_custom_call.1} parent=1 // pred_check
      _
    $region11: #{tpu_custom_call.1} parent=1 // pred_check_branch
      %39 = sbr.rel (0) target = $region13
    $region12: #{tpu_custom_call.1} parent=1 // pred_region
      _
    $region13: #{tpu_custom_call.1} parent=1 // pred_fallthru
      _
    // Predicated region
    $region14: #{tpu_custom_call.1} parent=1 // pred_check
      _
    $region15: #{tpu_custom_call.1} parent=1 // pred_check_branch
      %41 = sbr.rel (0) target = $region17
    $region16: #{tpu_custom_call.1} parent=1 // pred_region
      %s43 = ssub.s32 2048, 2048
      %44 = vsyncadd [#allocation6], %s43
      %s45 = sshll.u32 [#allocation7], 4
      %s46 = int_to_ptr.vmem [resolvable:$true] %s45
      %51 = dma.hbm_to_vmem [thread:$0]  %s3, 2048, %s46, [#allocation6], 128, 128, 8
    $region17: #{tpu_custom_call.1} parent=1 // pred_fallthru
      _
    // Predicated region
    $region18: #{tpu_custom_call.1} parent=1 // pred_check
      _
    $region19: #{tpu_custom_call.1} parent=1 // pred_check_branch
      %53 = sbr.rel (0) target = $region21
    $region20: #{tpu_custom_call.1} parent=1 // pred_region
      _
    $region21: #{tpu_custom_call.1} parent=1 // pred_fallthru
      _
    // Predicated region
    $region22: #{tpu_custom_call.1} parent=1 // pred_check
      _
    $region23: #{tpu_custom_call.1} parent=1 // pred_check_branch
      %55 = sbr.rel (0) target = $region25
    $region24: #{tpu_custom_call.1} parent=1 // pred_region
      %s57 = ssub.s32 8192, 8192
      %58 = vsyncadd [#allocation9], %s57
      %s59 = sshll.u32 [#allocation8], 4
      %s60 = int_to_ptr.vmem [resolvable:$true] %s59
      %65 = dma.hbm_to_vmem [thread:$0]  %s5, 8192, %s60, [#allocation9], 256, 256, 16
    $region25: #{tpu_custom_call.1} parent=1 // pred_fallthru
      _
    // Predicated region
    $region26: #{tpu_custom_call.1} parent=1 // pred_check
      _
    $region27: #{tpu_custom_call.1} parent=1 // pred_check_branch
      %67 = sbr.rel (0) target = $region29
    $region28: #{tpu_custom_call.1} parent=1 // pred_region
      _
    $region29: #{tpu_custom_call.1} parent=1 // pred_fallthru
      _
    // Predicated region
    $region30: #{tpu_custom_call.1} parent=1 // pred_check
      _
    $region31: #{tpu_custom_call.1} parent=1 // pred_check_branch
      %69 = sbr.rel (0) target = $region33
    $region32: #{tpu_custom_call.1} parent=1 // pred_region
      %70 = dma.done [#allocation3], 64
    $region33: #{tpu_custom_call.1} parent=1 // pred_fallthru
      _
    // Predicated region
    $region34: #{tpu_custom_call.1} parent=1 // pred_check
      _
    $region35: #{tpu_custom_call.1} parent=1 // pred_check_branch
      %72 = sbr.rel (0) target = $region37
    $region36: #{tpu_custom_call.1} parent=1 // pred_region
      %73 = dma.done [#allocation6], 1024
    $region37: #{tpu_custom_call.1} parent=1 // pred_fallthru
      _
    // Predicated region
    $region38: #{tpu_custom_call.1} parent=1 // pred_check
      _
    $region39: #{tpu_custom_call.1} parent=1 // pred_check_branch
      %75 = sbr.rel (0) target = $region41
    $region40: #{tpu_custom_call.1} parent=1 // pred_region
      %76 = dma.done [#allocation6], 2048
    $region41: #{tpu_custom_call.1} parent=1 // pred_fallthru
      _
    // Predicated region
    $region42: #{tpu_custom_call.1} parent=1 // pred_check
      _
    $region43: #{tpu_custom_call.1} parent=1 // pred_check_branch
      %78 = sbr.rel (0) target = $region45
    $region44: #{tpu_custom_call.1} parent=1 // pred_region
      %79 = dma.done [#allocation9], 8192
    $region45: #{tpu_custom_call.1} parent=1 // pred_fallthru
      _
    %v81 = vld [vmem:[#allocation2] sm:$0xf]
    %v82 = vld [vmem:[#allocation5] sm:$0xf]
    %v83 = vld [vmem:[#allocation5 + $0x4] sm:$0xf]
    %v84 = vld [vmem:[#allocation5 + $0x8] sm:$0xf]
    %v85 = vld [vmem:[#allocation5 + $0xc] sm:$0xf]
    %v86 = vld [vmem:[#allocation5 + $0x10] sm:$0xf]
    %v87 = vld [vmem:[#allocation5 + $0x14] sm:$0xf]
    %v88 = vld [vmem:[#allocation5 + $0x18] sm:$0xf]
    %v89 = vld [vmem:[#allocation5 + $0x1c] sm:$0xf]
    %v90 = vld [vmem:[#allocation5 + $0x20] sm:$0xf]
    %v91 = vld [vmem:[#allocation5 + $0x24] sm:$0xf]
    %v92 = vld [vmem:[#allocation5 + $0x28] sm:$0xf]
    %v93 = vld [vmem:[#allocation5 + $0x2c] sm:$0xf]
    %v94 = vld [vmem:[#allocation5 + $0x30] sm:$0xf]
    %v95 = vld [vmem:[#allocation5 + $0x34] sm:$0xf]
    %v96 = vld [vmem:[#allocation5 + $0x38] sm:$0xf]
    %v97 = vld [vmem:[#allocation5 + $0x3c] sm:$0xf]
    %v98 = vld [vmem:[%s2] sm:$0x1]
    %v100 = vlaneseq
    %v101 = vshrl.u32 %v100, 7
    %v102 = vsub.s32 0, %v101
    %v103 = vrot.slane %v98, %v102
    %v121 = vunpack.c.l.b16 %v82
    %v122 = vunpack.c.l.b16 %v83
    %v123 = vunpack.c.l.b16 %v84
    %v124 = vunpack.c.l.b16 %v85
    %v125 = vunpack.c.l.b16 %v86
    %v126 = vunpack.c.l.b16 %v87
    %v127 = vunpack.c.l.b16 %v88
    %v128 = vunpack.c.l.b16 %v89
    %v129 = vunpack.c.l.b16 %v90
    %v130 = vunpack.c.l.b16 %v91
    %v131 = vunpack.c.l.b16 %v92
    %v132 = vunpack.c.l.b16 %v93
    %v133 = vunpack.c.l.b16 %v94
    %v134 = vunpack.c.l.b16 %v95
    %v135 = vunpack.c.l.b16 %v96
    %v136 = vunpack.c.l.b16 %v97
    %v137 = vpack.c.b16 %v122, %v121
    %v138 = vpack.c.b16 %v124, %v123
    %v139 = vpack.c.b16 %v126, %v125
    %v140 = vpack.c.b16 %v128, %v127
    %v141 = vpack.c.b16 %v130, %v129
    %v142 = vpack.c.b16 %v132, %v131
    %v143 = vpack.c.b16 %v134, %v133
    %v144 = vpack.c.b16 %v136, %v135
    %153 = vmatprep.subr.bf16.mxu0 0
    %154 = vmatpush1.bf16.msra.mxu0 %v137
    %155 = vmatprep.subr.bf16.mxu0 0
    %156 = vmatpush1.bf16.msra.mxu0 %v138
    %157 = vmatprep.subr.bf16.mxu0 0
    %158 = vmatpush1.bf16.msra.mxu0 %v139
    %159 = vmatprep.subr.bf16.mxu0 0
    %160 = vmatpush1.bf16.msra.mxu0 %v140
    %161 = vmatprep.subr.bf16.mxu0 0
    %162 = vmatpush1.bf16.msra.mxu0 %v141
    %163 = vmatprep.subr.bf16.mxu0 0
    %164 = vmatpush1.bf16.msra.mxu0 %v142
    %165 = vmatprep.subr.bf16.mxu0 0
    %166 = vmatpush1.bf16.msra.mxu0 %v143
    %167 = vmatprep.subr.bf16.mxu0 0
    %168 = vmatpush1.bf16.msra.mxu0 %v144
    %169 = vmatprep.subr.bf16.mxu0 0
    %170 = vmatpush1.bf16.msra.mxu0 0
    %171 = vmatprep.subr.bf16.mxu0 0
    %172 = vmatpush1.bf16.msra.mxu0 0
    %173 = vmatprep.subr.bf16.mxu0 0
    %174 = vmatpush1.bf16.msra.mxu0 0
    %175 = vmatprep.subr.bf16.mxu0 0
    %176 = vmatpush1.bf16.msra.mxu0 0
    %177 = vmatprep.subr.bf16.mxu0 0
    %178 = vmatpush1.bf16.msra.mxu0 0
    %179 = vmatprep.subr.bf16.mxu0 0
    %180 = vmatpush1.bf16.msra.mxu0 0
    %181 = vmatprep.subr.bf16.mxu0 0
    %182 = vmatpush1.bf16.msra.mxu0 0
    %183 = vmatprep.subr.bf16.mxu0 0
    %184 = vmatpush1.bf16.msra.mxu0 0
    %185 = vmatprep.mubr.bf16.mxu0 0
    %186 = vmatmul.mubr.bf16.gmra.mrb[0].mxu0 %v81
    %v187 = vpop.f32.mrb[0].mxu0
    %v188 = vadd.f32 %v103, %v187
    %v189 = vpop.f32.mrb[0].mxu0
    %v190 = vpop.f32.mrb[0].mxu0
    %v191 = vpop.f32.mrb[0].mxu0
    %192 = vdwg.mxu0
    %v193 = vmax.f32 %v188, 0.0
    %v194 = vpack.c.bf16 %v193, %v193
    %v195 = vld [vmem:[#allocation7] sm:$0xff]
    %v196 = vld [vmem:[#allocation7 + $0x8] sm:$0xff]
    %v197 = vld [vmem:[#allocation7 + $0x10] sm:$0xff]
    %v198 = vld [vmem:[#allocation7 + $0x18] sm:$0xff]
    %v199 = vld [vmem:[#allocation7 + $0x20] sm:$0xff]
    %v200 = vld [vmem:[#allocation7 + $0x28] sm:$0xff]
    %v201 = vld [vmem:[#allocation7 + $0x30] sm:$0xff]
    %v202 = vld [vmem:[#allocation7 + $0x38] sm:$0xff]
    %v203 = vld [vmem:[#allocation7 + $0x40] sm:$0xff]
    %v204 = vld [vmem:[#allocation7 + $0x48] sm:$0xff]
    %v205 = vld [vmem:[#allocation7 + $0x50] sm:$0xff]
    %v206 = vld [vmem:[#allocation7 + $0x58] sm:$0xff]
    %v207 = vld [vmem:[#allocation7 + $0x60] sm:$0xff]
    %v208 = vld [vmem:[#allocation7 + $0x68] sm:$0xff]
    %v209 = vld [vmem:[#allocation7 + $0x70] sm:$0xff]
    %v210 = vld [vmem:[#allocation7 + $0x78] sm:$0xff]
    %v211 = vld [vmem:[%s4] sm:$0x3]
    %v213 = vlaneseq
    %v214 = vshrl.u32 %v213, 7
    %v215 = vsub.s32 0, %v214
    %v216 = vrot.slane %v211, %v215
    %v217 = vlaneseq
    %v218 = vshrl.u32 %v217, 7
    %v219 = vsub.s32 1, %v218
    %v220 = vrot.slane %v211, %v219
    %v239 = vunpack.c.l.b16 %v195
    %v240 = vunpack.c.h.b16 %v195
    %v241 = vunpack.c.l.b16 %v196
    %v242 = vunpack.c.h.b16 %v196
    %v243 = vunpack.c.l.b16 %v197
    %v244 = vunpack.c.h.b16 %v197
    %v245 = vunpack.c.l.b16 %v198
    %v246 = vunpack.c.h.b16 %v198
    %v247 = vunpack.c.l.b16 %v199
    %v248 = vunpack.c.h.b16 %v199
    %v249 = vunpack.c.l.b16 %v200
    %v250 = vunpack.c.h.b16 %v200
    %v251 = vunpack.c.l.b16 %v201
    %v252 = vunpack.c.h.b16 %v201
    %v253 = vunpack.c.l.b16 %v202
    %v254 = vunpack.c.h.b16 %v202
    %v255 = vunpack.c.l.b16 %v203
    %v256 = vunpack.c.h.b16 %v203
    %v257 = vunpack.c.l.b16 %v204
    %v258 = vunpack.c.h.b16 %v204
    %v259 = vunpack.c.l.b16 %v205
    %v260 = vunpack.c.h.b16 %v205
    %v261 = vunpack.c.l.b16 %v206
    %v262 = vunpack.c.h.b16 %v206
    %v263 = vunpack.c.l.b16 %v207
    %v264 = vunpack.c.h.b16 %v207
    %v265 = vunpack.c.l.b16 %v208
    %v266 = vunpack.c.h.b16 %v208
    %v267 = vunpack.c.l.b16 %v209
    %v268 = vunpack.c.h.b16 %v209
    %v269 = vunpack.c.l.b16 %v210
    %v270 = vunpack.c.h.b16 %v210
    %v271 = vpack.c.b16 %v241, %v239
    %v272 = vpack.c.b16 %v242, %v240
    %v273 = vpack.c.b16 %v245, %v243
    %v274 = vpack.c.b16 %v246, %v244
    %v275 = vpack.c.b16 %v249, %v247
    %v276 = vpack.c.b16 %v250, %v248
    %v277 = vpack.c.b16 %v253, %v251
    %v278 = vpack.c.b16 %v254, %v252
    %v279 = vpack.c.b16 %v257, %v255
    %v280 = vpack.c.b16 %v258, %v256
    %v281 = vpack.c.b16 %v261, %v259
    %v282 = vpack.c.b16 %v262, %v260
    %v283 = vpack.c.b16 %v265, %v263
    %v284 = vpack.c.b16 %v266, %v264
    %v285 = vpack.c.b16 %v269, %v267
    %v286 = vpack.c.b16 %v270, %v268
    %303 = vmatprep.subr.bf16.mxu0 %v272
    %304 = vmatpush1.bf16.msra.mxu0 %v271
    %305 = vmatprep.subr.bf16.mxu0 %v274
    %306 = vmatpush1.bf16.msra.mxu0 %v273
    %307 = vmatprep.subr.bf16.mxu0 %v276
    %308 = vmatpush1.bf16.msra.mxu0 %v275
    %309 = vmatprep.subr.bf16.mxu0 %v278
    %310 = vmatpush1.bf16.msra.mxu0 %v277
    %311 = vmatprep.subr.bf16.mxu0 %v280
    %312 = vmatpush1.bf16.msra.mxu0 %v279
    %313 = vmatprep.subr.bf16.mxu0 %v282
    %314 = vmatpush1.bf16.msra.mxu0 %v281
    %315 = vmatprep.subr.bf16.mxu0 %v284
    %316 = vmatpush1.bf16.msra.mxu0 %v283
    %317 = vmatprep.subr.bf16.mxu0 %v286
    %318 = vmatpush1.bf16.msra.mxu0 %v285
    %319 = vmatprep.subr.bf16.mxu0 0
    %320 = vmatpush1.bf16.msra.mxu0 0
    %321 = vmatprep.subr.bf16.mxu0 0
    %322 = vmatpush1.bf16.msra.mxu0 0
    %323 = vmatprep.subr.bf16.mxu0 0
    %324 = vmatpush1.bf16.msra.mxu0 0
    %325 = vmatprep.subr.bf16.mxu0 0
    %326 = vmatpush1.bf16.msra.mxu0 0
    %327 = vmatprep.subr.bf16.mxu0 0
    %328 = vmatpush1.bf16.msra.mxu0 0
    %329 = vmatprep.subr.bf16.mxu0 0
    %330 = vmatpush1.bf16.msra.mxu0 0
    %331 = vmatprep.subr.bf16.mxu0 0
    %332 = vmatpush1.bf16.msra.mxu0 0
    %333 = vmatprep.subr.bf16.mxu0 0
    %334 = vmatpush1.bf16.msra.mxu0 0
    %335 = vmatprep.mubr.bf16.mxu0 0
    %336 = vmatmul.mubr.bf16.gmra.mrb[0].mxu0 %v194
    %v337 = vpop.f32.mrb[0].mxu0
    %v338 = vadd.f32 %v216, %v337
    %v339 = vpop.f32.mrb[0].mxu0
    %v340 = vadd.f32 %v220, %v339
    %v341 = vpop.f32.mrb[0].mxu0
    %v342 = vpop.f32.mrb[0].mxu0
    %343 = vdwg.mxu0
    %v344 = vmax.f32 %v338, 0.0
    %v345 = vmax.f32 %v340, 0.0
    %v346 = vpack.c.bf16 %v344, %v344
    %v347 = vpack.c.bf16 %v345, %v345
    %v348 = vld [vmem:[#allocation8] sm:$0xff]
    %v349 = vld [vmem:[#allocation8 + $0x8] sm:$0xff]
    %v350 = vld [vmem:[#allocation8 + $0x10] sm:$0xff]
    %v351 = vld [vmem:[#allocation8 + $0x18] sm:$0xff]
    %v352 = vld [vmem:[#allocation8 + $0x20] sm:$0xff]
    %v353 = vld [vmem:[#allocation8 + $0x28] sm:$0xff]
    %v354 = vld [vmem:[#allocation8 + $0x30] sm:$0xff]
    %v355 = vld [vmem:[#allocation8 + $0x38] sm:$0xff]
    %v356 = vld [vmem:[#allocation8 + $0x40] sm:$0xff]
    %v357 = vld [vmem:[#allocation8 + $0x48] sm:$0xff]
    %v358 = vld [vmem:[#allocation8 + $0x50] sm:$0xff]
    %v359 = vld [vmem:[#allocation8 + $0x58] sm:$0xff]
    %v360 = vld [vmem:[#allocation8 + $0x60] sm:$0xff]
    %v361 = vld [vmem:[#allocation8 + $0x68] sm:$0xff]
    %v362 = vld [vmem:[#allocation8 + $0x70] sm:$0xff]
    %v363 = vld [vmem:[#allocation8 + $0x78] sm:$0xff]
    %v364 = vld [vmem:[#allocation8 + $0x80] sm:$0xff]
    %v365 = vld [vmem:[#allocation8 + $0x88] sm:$0xff]
    %v366 = vld [vmem:[#allocation8 + $0x90] sm:$0xff]
    %v367 = vld [vmem:[#allocation8 + $0x98] sm:$0xff]
    %v368 = vld [vmem:[#allocation8 + $0xa0] sm:$0xff]
    %v369 = vld [vmem:[#allocation8 + $0xa8] sm:$0xff]
    %v370 = vld [vmem:[#allocation8 + $0xb0] sm:$0xff]
    %v371 = vld [vmem:[#allocation8 + $0xb8] sm:$0xff]
    %v372 = vld [vmem:[#allocation8 + $0xc0] sm:$0xff]
    %v373 = vld [vmem:[#allocation8 + $0xc8] sm:$0xff]
    %v374 = vld [vmem:[#allocation8 + $0xd0] sm:$0xff]
    %v375 = vld [vmem:[#allocation8 + $0xd8] sm:$0xff]
    %v376 = vld [vmem:[#allocation8 + $0xe0] sm:$0xff]
    %v377 = vld [vmem:[#allocation8 + $0xe8] sm:$0xff]
    %v378 = vld [vmem:[#allocation8 + $0xf0] sm:$0xff]
    %v379 = vld [vmem:[#allocation8 + $0xf8] sm:$0xff]
    %v380 = vld [vmem:[#allocation8 + $0x100] sm:$0xff]
    %v381 = vld [vmem:[#allocation8 + $0x108] sm:$0xff]
    %v382 = vld [vmem:[#allocation8 + $0x110] sm:$0xff]
    %v383 = vld [vmem:[#allocation8 + $0x118] sm:$0xff]
    %v384 = vld [vmem:[#allocation8 + $0x120] sm:$0xff]
    %v385 = vld [vmem:[#allocation8 + $0x128] sm:$0xff]
    %v386 = vld [vmem:[#allocation8 + $0x130] sm:$0xff]
    %v387 = vld [vmem:[#allocation8 + $0x138] sm:$0xff]
    %v388 = vld [vmem:[#allocation8 + $0x140] sm:$0xff]
    %v389 = vld [vmem:[#allocation8 + $0x148] sm:$0xff]
    %v390 = vld [vmem:[#allocation8 + $0x150] sm:$0xff]
    %v391 = vld [vmem:[#allocation8 + $0x158] sm:$0xff]
    %v392 = vld [vmem:[#allocation8 + $0x160] sm:$0xff]
    %v393 = vld [vmem:[#allocation8 + $0x168] sm:$0xff]
    %v394 = vld [vmem:[#allocation8 + $0x170] sm:$0xff]
    %v395 = vld [vmem:[#allocation8 + $0x178] sm:$0xff]
    %v396 = vld [vmem:[#allocation8 + $0x180] sm:$0xff]
    %v397 = vld [vmem:[#allocation8 + $0x188] sm:$0xff]
    %v398 = vld [vmem:[#allocation8 + $0x190] sm:$0xff]
    %v399 = vld [vmem:[#allocation8 + $0x198] sm:$0xff]
    %v400 = vld [vmem:[#allocation8 + $0x1a0] sm:$0xff]
    %v401 = vld [vmem:[#allocation8 + $0x1a8] sm:$0xff]
    %v402 = vld [vmem:[#allocation8 + $0x1b0] sm:$0xff]
    %v403 = vld [vmem:[#allocation8 + $0x1b8] sm:$0xff]
    %v404 = vld [vmem:[#allocation8 + $0x1c0] sm:$0xff]
    %v405 = vld [vmem:[#allocation8 + $0x1c8] sm:$0xff]
    %v406 = vld [vmem:[#allocation8 + $0x1d0] sm:$0xff]
    %v407 = vld [vmem:[#allocation8 + $0x1d8] sm:$0xff]
    %v408 = vld [vmem:[#allocation8 + $0x1e0] sm:$0xff]
    %v409 = vld [vmem:[#allocation8 + $0x1e8] sm:$0xff]
    %v410 = vld [vmem:[#allocation8 + $0x1f0] sm:$0xff]
    %v411 = vld [vmem:[#allocation8 + $0x1f8] sm:$0xff]
    %v412 = vld [vmem:[%s6] sm:$0xf]
    %v414 = vlaneseq
    %v415 = vshrl.u32 %v414, 7
    %v416 = vsub.s32 0, %v415
    %v417 = vrot.slane %v412, %v416
    %v418 = vlaneseq
    %v419 = vshrl.u32 %v418, 7
    %v420 = vsub.s32 1, %v419
    %v421 = vrot.slane %v412, %v420
    %v422 = vlaneseq
    %v423 = vshrl.u32 %v422, 7
    %v424 = vsub.s32 2, %v423
    %v425 = vrot.slane %v412, %v424
    %v426 = vlaneseq
    %v427 = vshrl.u32 %v426, 7
    %v428 = vsub.s32 3, %v427
    %v429 = vrot.slane %v412, %v428
    %v498 = vunpack.c.l.b16 %v348
    %v499 = vunpack.c.h.b16 %v348
    %v500 = vunpack.c.l.b16 %v349
    %v501 = vunpack.c.h.b16 %v349
    %v502 = vunpack.c.l.b16 %v350
    %v503 = vunpack.c.h.b16 %v350
    %v504 = vunpack.c.l.b16 %v351
    %v505 = vunpack.c.h.b16 %v351
    %v506 = vunpack.c.l.b16 %v352
    %v507 = vunpack.c.h.b16 %v352
    %v508 = vunpack.c.l.b16 %v353
    %v509 = vunpack.c.h.b16 %v353
    %v510 = vunpack.c.l.b16 %v354
    %v511 = vunpack.c.h.b16 %v354
    %v512 = vunpack.c.l.b16 %v355
    %v513 = vunpack.c.h.b16 %v355
    %v514 = vunpack.c.l.b16 %v356
    %v515 = vunpack.c.h.b16 %v356
    %v516 = vunpack.c.l.b16 %v357
    %v517 = vunpack.c.h.b16 %v357
    %v518 = vunpack.c.l.b16 %v358
    %v519 = vunpack.c.h.b16 %v358
    %v520 = vunpack.c.l.b16 %v359
    %v521 = vunpack.c.h.b16 %v359
    %v522 = vunpack.c.l.b16 %v360
    %v523 = vunpack.c.h.b16 %v360
    %v524 = vunpack.c.l.b16 %v361
    %v525 = vunpack.c.h.b16 %v361
    %v526 = vunpack.c.l.b16 %v362
    %v527 = vunpack.c.h.b16 %v362
    %v528 = vunpack.c.l.b16 %v363
    %v529 = vunpack.c.h.b16 %v363
    %v530 = vunpack.c.l.b16 %v364
    %v531 = vunpack.c.h.b16 %v364
    %v532 = vunpack.c.l.b16 %v365
    %v533 = vunpack.c.h.b16 %v365
    %v534 = vunpack.c.l.b16 %v366
    %v535 = vunpack.c.h.b16 %v366
    %v536 = vunpack.c.l.b16 %v367
    %v537 = vunpack.c.h.b16 %v367
    %v538 = vunpack.c.l.b16 %v368
    %v539 = vunpack.c.h.b16 %v368
    %v540 = vunpack.c.l.b16 %v369
    %v541 = vunpack.c.h.b16 %v369
    %v542 = vunpack.c.l.b16 %v370
    %v543 = vunpack.c.h.b16 %v370
    %v544 = vunpack.c.l.b16 %v371
    %v545 = vunpack.c.h.b16 %v371
    %v546 = vunpack.c.l.b16 %v372
    %v547 = vunpack.c.h.b16 %v372
    %v548 = vunpack.c.l.b16 %v373
    %v549 = vunpack.c.h.b16 %v373
    %v550 = vunpack.c.l.b16 %v374
    %v551 = vunpack.c.h.b16 %v374
    %v552 = vunpack.c.l.b16 %v375
    %v553 = vunpack.c.h.b16 %v375
    %v554 = vunpack.c.l.b16 %v376
    %v555 = vunpack.c.h.b16 %v376
    %v556 = vunpack.c.l.b16 %v377
    %v557 = vunpack.c.h.b16 %v377
    %v558 = vunpack.c.l.b16 %v378
    %v559 = vunpack.c.h.b16 %v378
    %v560 = vunpack.c.l.b16 %v379
    %v561 = vunpack.c.h.b16 %v379
    %v562 = vunpack.c.l.b16 %v380
    %v563 = vunpack.c.h.b16 %v380
    %v564 = vunpack.c.l.b16 %v381
    %v565 = vunpack.c.h.b16 %v381
    %v566 = vunpack.c.l.b16 %v382
    %v567 = vunpack.c.h.b16 %v382
    %v568 = vunpack.c.l.b16 %v383
    %v569 = vunpack.c.h.b16 %v383
    %v570 = vunpack.c.l.b16 %v384
    %v571 = vunpack.c.h.b16 %v384
    %v572 = vunpack.c.l.b16 %v385
    %v573 = vunpack.c.h.b16 %v385
    %v574 = vunpack.c.l.b16 %v386
    %v575 = vunpack.c.h.b16 %v386
    %v576 = vunpack.c.l.b16 %v387
    %v577 = vunpack.c.h.b16 %v387
    %v578 = vunpack.c.l.b16 %v388
    %v579 = vunpack.c.h.b16 %v388
    %v580 = vunpack.c.l.b16 %v389
    %v581 = vunpack.c.h.b16 %v389
    %v582 = vunpack.c.l.b16 %v390
    %v583 = vunpack.c.h.b16 %v390
    %v584 = vunpack.c.l.b16 %v391
    %v585 = vunpack.c.h.b16 %v391
    %v586 = vunpack.c.l.b16 %v392
    %v587 = vunpack.c.h.b16 %v392
    %v588 = vunpack.c.l.b16 %v393
    %v589 = vunpack.c.h.b16 %v393
    %v590 = vunpack.c.l.b16 %v394
    %v591 = vunpack.c.h.b16 %v394
    %v592 = vunpack.c.l.b16 %v395
    %v593 = vunpack.c.h.b16 %v395
    %v594 = vunpack.c.l.b16 %v396
    %v595 = vunpack.c.h.b16 %v396
    %v596 = vunpack.c.l.b16 %v397
    %v597 = vunpack.c.h.b16 %v397
    %v598 = vunpack.c.l.b16 %v398
    %v599 = vunpack.c.h.b16 %v398
    %v600 = vunpack.c.l.b16 %v399
    %v601 = vunpack.c.h.b16 %v399
    %v602 = vunpack.c.l.b16 %v400
    %v603 = vunpack.c.h.b16 %v400
    %v604 = vunpack.c.l.b16 %v401
    %v605 = vunpack.c.h.b16 %v401
    %v606 = vunpack.c.l.b16 %v402
    %v607 = vunpack.c.h.b16 %v402
    %v608 = vunpack.c.l.b16 %v403
    %v609 = vunpack.c.h.b16 %v403
    %v610 = vunpack.c.l.b16 %v404
    %v611 = vunpack.c.h.b16 %v404
    %v612 = vunpack.c.l.b16 %v405
    %v613 = vunpack.c.h.b16 %v405
    %v614 = vunpack.c.l.b16 %v406
    %v615 = vunpack.c.h.b16 %v406
    %v616 = vunpack.c.l.b16 %v407
    %v617 = vunpack.c.h.b16 %v407
    %v618 = vunpack.c.l.b16 %v408
    %v619 = vunpack.c.h.b16 %v408
    %v620 = vunpack.c.l.b16 %v409
    %v621 = vunpack.c.h.b16 %v409
    %v622 = vunpack.c.l.b16 %v410
    %v623 = vunpack.c.h.b16 %v410
    %v624 = vunpack.c.l.b16 %v411
    %v625 = vunpack.c.h.b16 %v411
    %v626 = vpack.c.b16 %v502, %v498
    %v627 = vpack.c.b16 %v503, %v499
    %v628 = vpack.c.b16 %v504, %v500
    %v629 = vpack.c.b16 %v505, %v501
    %v630 = vpack.c.b16 %v510, %v506
    %v631 = vpack.c.b16 %v511, %v507
    %v632 = vpack.c.b16 %v512, %v508
    %v633 = vpack.c.b16 %v513, %v509
    %v634 = vpack.c.b16 %v518, %v514
    %v635 = vpack.c.b16 %v519, %v515
    %v636 = vpack.c.b16 %v520, %v516
    %v637 = vpack.c.b16 %v521, %v517
    %v638 = vpack.c.b16 %v526, %v522
    %v639 = vpack.c.b16 %v527, %v523
    %v640 = vpack.c.b16 %v528, %v524
    %v641 = vpack.c.b16 %v529, %v525
    %v642 = vpack.c.b16 %v534, %v530
    %v643 = vpack.c.b16 %v535, %v531
    %v644 = vpack.c.b16 %v536, %v532
    %v645 = vpack.c.b16 %v537, %v533
    %v646 = vpack.c.b16 %v542, %v538
    %v647 = vpack.c.b16 %v543, %v539
    %v648 = vpack.c.b16 %v544, %v540
    %v649 = vpack.c.b16 %v545, %v541
    %v650 = vpack.c.b16 %v550, %v546
    %v651 = vpack.c.b16 %v551, %v547
    %v652 = vpack.c.b16 %v552, %v548
    %v653 = vpack.c.b16 %v553, %v549
    %v654 = vpack.c.b16 %v558, %v554
    %v655 = vpack.c.b16 %v559, %v555
    %v656 = vpack.c.b16 %v560, %v556
    %v657 = vpack.c.b16 %v561, %v557
    %v658 = vpack.c.b16 %v566, %v562
    %v659 = vpack.c.b16 %v567, %v563
    %v660 = vpack.c.b16 %v568, %v564
    %v661 = vpack.c.b16 %v569, %v565
    %v662 = vpack.c.b16 %v574, %v570
    %v663 = vpack.c.b16 %v575, %v571
    %v664 = vpack.c.b16 %v576, %v572
    %v665 = vpack.c.b16 %v577, %v573
    %v666 = vpack.c.b16 %v582, %v578
    %v667 = vpack.c.b16 %v583, %v579
    %v668 = vpack.c.b16 %v584, %v580
    %v669 = vpack.c.b16 %v585, %v581
    %v670 = vpack.c.b16 %v590, %v586
    %v671 = vpack.c.b16 %v591, %v587
    %v672 = vpack.c.b16 %v592, %v588
    %v673 = vpack.c.b16 %v593, %v589
    %v674 = vpack.c.b16 %v598, %v594
    %v675 = vpack.c.b16 %v599, %v595
    %v676 = vpack.c.b16 %v600, %v596
    %v677 = vpack.c.b16 %v601, %v597
    %v678 = vpack.c.b16 %v606, %v602
    %v679 = vpack.c.b16 %v607, %v603
    %v680 = vpack.c.b16 %v608, %v604
    %v681 = vpack.c.b16 %v609, %v605
    %v682 = vpack.c.b16 %v614, %v610
    %v683 = vpack.c.b16 %v615, %v611
    %v684 = vpack.c.b16 %v616, %v612
    %v685 = vpack.c.b16 %v617, %v613
    %v686 = vpack.c.b16 %v622, %v618
    %v687 = vpack.c.b16 %v623, %v619
    %v688 = vpack.c.b16 %v624, %v620
    %v689 = vpack.c.b16 %v625, %v621
    %754 = vmatprep.subr.bf16.mxu0 %v627
    %755 = vmatpush1.bf16.msra.mxu0 %v626
    %756 = vmatprep.subr.bf16.mxu0 %v631
    %757 = vmatpush1.bf16.msra.mxu0 %v630
    %758 = vmatprep.subr.bf16.mxu0 %v635
    %759 = vmatpush1.bf16.msra.mxu0 %v634
    %760 = vmatprep.subr.bf16.mxu0 %v639
    %761 = vmatpush1.bf16.msra.mxu0 %v638
    %762 = vmatprep.subr.bf16.mxu0 %v643
    %763 = vmatpush1.bf16.msra.mxu0 %v642
    %764 = vmatprep.subr.bf16.mxu0 %v647
    %765 = vmatpush1.bf16.msra.mxu0 %v646
    %766 = vmatprep.subr.bf16.mxu0 %v651
    %767 = vmatpush1.bf16.msra.mxu0 %v650
    %768 = vmatprep.subr.bf16.mxu0 %v655
    %769 = vmatpush1.bf16.msra.mxu0 %v654
    %770 = vmatprep.subr.bf16.mxu0 %v659
    %771 = vmatpush1.bf16.msra.mxu0 %v658
    %772 = vmatprep.subr.bf16.mxu0 %v663
    %773 = vmatpush1.bf16.msra.mxu0 %v662
    %774 = vmatprep.subr.bf16.mxu0 %v667
    %775 = vmatpush1.bf16.msra.mxu0 %v666
    %776 = vmatprep.subr.bf16.mxu0 %v671
    %777 = vmatpush1.bf16.msra.mxu0 %v670
    %778 = vmatprep.subr.bf16.mxu0 %v675
    %779 = vmatpush1.bf16.msra.mxu0 %v674
    %780 = vmatprep.subr.bf16.mxu0 %v679
    %781 = vmatpush1.bf16.msra.mxu0 %v678
    %782 = vmatprep.subr.bf16.mxu0 %v683
    %783 = vmatpush1.bf16.msra.mxu0 %v682
    %784 = vmatprep.subr.bf16.mxu0 %v687
    %785 = vmatpush1.bf16.msra.mxu0 %v686
    %786 = vmatprep.mubr.bf16.mxu0 %v347
    %787 = vmatmul.mubr.bf16.gmra.mrb[0].mxu0 %v346
    %v788 = vpop.f32.mrb[0].mxu0
    %v789 = vadd.f32 %v417, %v788
    %v790 = vpop.f32.mrb[0].mxu0
    %v791 = vadd.f32 %v421, %v790
    %v792 = vpop.f32.mrb[0].mxu0
    %v793 = vpop.f32.mrb[0].mxu0
    %794 = vdwg.mxu0
    %795 = vmatprep.subr.bf16.mxu0 %v629
    %796 = vmatpush1.bf16.msra.mxu0 %v628
    %797 = vmatprep.subr.bf16.mxu0 %v633
    %798 = vmatpush1.bf16.msra.mxu0 %v632
    %799 = vmatprep.subr.bf16.mxu0 %v637
    %800 = vmatpush1.bf16.msra.mxu0 %v636
    %801 = vmatprep.subr.bf16.mxu0 %v641
    %802 = vmatpush1.bf16.msra.mxu0 %v640
    %803 = vmatprep.subr.bf16.mxu0 %v645
    %804 = vmatpush1.bf16.msra.mxu0 %v644
    %805 = vmatprep.subr.bf16.mxu0 %v649
    %806 = vmatpush1.bf16.msra.mxu0 %v648
    %807 = vmatprep.subr.bf16.mxu0 %v653
    %808 = vmatpush1.bf16.msra.mxu0 %v652
    %809 = vmatprep.subr.bf16.mxu0 %v657
    %810 = vmatpush1.bf16.msra.mxu0 %v656
    %811 = vmatprep.subr.bf16.mxu0 %v661
    %812 = vmatpush1.bf16.msra.mxu0 %v660
    %813 = vmatprep.subr.bf16.mxu0 %v665
    %814 = vmatpush1.bf16.msra.mxu0 %v664
    %815 = vmatprep.subr.bf16.mxu0 %v669
    %816 = vmatpush1.bf16.msra.mxu0 %v668
    %817 = vmatprep.subr.bf16.mxu0 %v673
    %818 = vmatpush1.bf16.msra.mxu0 %v672
    %819 = vmatprep.subr.bf16.mxu0 %v677
    %820 = vmatpush1.bf16.msra.mxu0 %v676
    %821 = vmatprep.subr.bf16.mxu0 %v681
    %822 = vmatpush1.bf16.msra.mxu0 %v680
    %823 = vmatprep.subr.bf16.mxu0 %v685
    %824 = vmatpush1.bf16.msra.mxu0 %v684
    %825 = vmatprep.subr.bf16.mxu0 %v689
    %826 = vmatpush1.bf16.msra.mxu0 %v688
    %827 = vmatprep.mubr.bf16.mxu0 %v347
    %828 = vmatmul.mubr.bf16.gmra.mrb[0].mxu0 %v346
    %v829 = vpop.f32.mrb[0].mxu0
    %v830 = vadd.f32 %v425, %v829
    %v831 = vpop.f32.mrb[0].mxu0
    %v832 = vadd.f32 %v429, %v831
    %v833 = vpop.f32.mrb[0].mxu0
    %v834 = vpop.f32.mrb[0].mxu0
    %835 = vdwg.mxu0
    %v836 = vtanh.pop %v789
    %v837 = vtanh.pop %v791
    %v838 = vtanh.pop %v830
    %v839 = vtanh.pop %v832
    %840 = vst [vmem:[#allocation10] sm:$0xff] %v836
    %841 = vst [vmem:[#allocation10 + $0x8] sm:$0xff] %v837
    %842 = vst [vmem:[#allocation10 + $0x10] sm:$0xff] %v838
    %843 = vst [vmem:[#allocation10 + $0x18] sm:$0xff] %v839
    // Predicated region
    $region46: #{tpu_custom_call.1} parent=1 // pred_check
      _
    $region47: #{tpu_custom_call.1} parent=1 // pred_check_branch
      %845 = sbr.rel (0) target = $region49
    $region48: #{tpu_custom_call.1} parent=1 // pred_region
      %s847 = ssub.s32 512, 512
      %848 = vsyncadd [#allocation4], %s847
      %s850 = sshll.u32 [#allocation10], 4
      %s851 = int_to_ptr.vmem [resolvable:$true] %s850
      %853 = dma.vmem_to_hbm [thread:$0]  %s851, 512, %s7, [#allocation4]
    $region49: #{tpu_custom_call.1} parent=1 // pred_fallthru
      _
    // Predicated region
    $region50: #{tpu_custom_call.1} parent=1 // pred_check
      _
    $region51: #{tpu_custom_call.1} parent=1 // pred_check_branch
      %855 = sbr.rel (0) target = $region53
    $region52: #{tpu_custom_call.1} parent=1 // pred_region
      %856 = dma.done [#allocation4], 512
    $region53: #{tpu_custom_call.1} parent=1 // pred_fallthru
      _
    %857 = vsyncpa [#allocation3], 1
    %858 = vsyncpa [#allocation6], 1
    %859 = vsyncpa [#allocation9], 1
    %860 = vsyncpa [#allocation4], 1

</llo_original>
